<compile_context>
chip_gen: v5e
topology: v5e:2x2
jax: 0.10.0
libtpu: 0.0.40
codegen_flags: <defaults>
</compile_context>

<pallas_src>
import jax
import jax.numpy as jnp
from jax.experimental import pallas as pl
from jax.experimental.pallas import tpu as pltpu

NEG_SLOPE = 0.9


def _leaky_relu(h, negative_slope=NEG_SLOPE):
    # f32 elementwise on the VPU.
    return jnp.where(h >= 0, h, negative_slope * h)


def _round_up(x, m):
    return ((x + m - 1) // m) * m


def dnn_kernel(x_ref,
               w1_ref, b1_ref,
               w2_ref, b2_ref,
               w3_ref, b3_ref,
               w4_ref, b4_ref,
               out_ref):
    """Fused 4-layer MLP + LogSoftmax for one (TB, input_size) batch tile.

    x arrives in its native dtype and is cast to the weight (streaming) dtype
    in-kernel; every matmul accumulates in f32 on the MXU and all elementwise
    math (bias, LeakyReLU, log-softmax) is done in f32.  Intermediate
    activations are re-cast to bf16 only as MXU operands.
    """
    cdt = w1_ref.dtype  # compute (streaming) dtype, bf16

    x = x_ref[...].astype(cdt)                                        # (TB, in)
    h = _leaky_relu(
        jnp.dot(x, w1_ref[...], preferred_element_type=jnp.float32) + b1_ref[...])
    h = _leaky_relu(
        jnp.dot(h.astype(cdt), w2_ref[...],
                preferred_element_type=jnp.float32) + b2_ref[...])
    h = _leaky_relu(
        jnp.dot(h.astype(cdt), w3_ref[...],
                preferred_element_type=jnp.float32) + b3_ref[...])
    logits = _leaky_relu(
        jnp.dot(h.astype(cdt), w4_ref[...],
                preferred_element_type=jnp.float32) + b4_ref[...])    # (TB, C) f32

    # Numerically stable LogSoftmax(dim=1) in f32.
    m = jnp.max(logits, axis=1, keepdims=True)
    shifted = logits - m
    lse = jnp.log(jnp.sum(jnp.exp(shifted), axis=1, keepdims=True))
    out_ref[...] = (shifted - lse).astype(out_ref.dtype)


def _estimate_vmem_bytes(tb, input_size, layer_dims, num_class,
                         in_bytes, out_bytes, cbytes):
    """Conservative per-step VMEM footprint (double-buffered IO + temporaries)."""
    io = 2 * tb * input_size * in_bytes + 2 * tb * num_class * out_bytes
    # In-kernel temporaries: bf16 copy of x + f32 accumulator + bf16 MXU
    # operand copy per intermediate width (upper bound, ignores dead ranges).
    acts = tb * input_size * cbytes
    acts += tb * sum(layer_dims) * (4 + cbytes)
    dims = [input_size] + list(layer_dims)
    weights = 0
    for fan_in, fan_out in zip(dims[:-1], dims[1:]):
        weights += 2 * (fan_in * fan_out * cbytes + fan_out * 4)
    return io + acts + weights


def _pick_batch_tile(b, batch_tile):
    """>=1 MB per step when possible, and >=2 grid steps for v7x megacore."""
    if b <= 8:
        return b                       # single block == full array dim (allowed)
    tb = min(batch_tile, _round_up(b, 8))
    if pl.cdiv(b, tb) < 2:
        # Split a single-step grid in two so both v7x TensorCores get work.
        tb = _round_up(pl.cdiv(b, 2), 8)
    return tb


def dnn_forward(x, params, *, batch_tile=8192, compute_dtype=jnp.bfloat16,
                out_dtype=jnp.float32):
    """x: any array with leading batch dim; flattened to (B, input_size)."""
    b = x.shape[0]
    x2d = x.reshape(b, -1)              # view only; no wrapper-side cast/pad
    input_size = x2d.shape[1]

    (w1, b1), (w2, b2), (w3, b3), (w4, b4) = params
    num_class = w4.shape[1]

    # Stream weights as bf16 (MXU-native, halves weight bytes); keep biases
    # (added to the f32 accumulator) in f32.
    w1, w2, w3, w4 = (w.astype(compute_dtype) for w in (w1, w2, w3, w4))
    b1, b2, b3, b4 = (bb.astype(jnp.float32) for bb in (b1, b2, b3, b4))

    tb = _pick_batch_tile(b, batch_tile)
    grid = (pl.cdiv(b, tb),)            # ragged last block handled by Pallas

    # Raise the scoped-VMEM limit only if an aggressive tile would exceed the
    # v5e 16 MiB default (no-op for the default 8192-row tile).
    est = _estimate_vmem_bytes(tb, input_size,
                               [w1.shape[1], w2.shape[1], w3.shape[1]],
                               num_class,
                               jnp.dtype(x2d.dtype).itemsize,
                               jnp.dtype(out_dtype).itemsize,
                               jnp.dtype(compute_dtype).itemsize)
    vmem_limit = None
    if est > 14 * 1024 * 1024:
        vmem_limit = min(_round_up(int(est * 1.25), 1 << 20), 48 * 1024 * 1024)

    const2d = lambda i: (0, 0)          # weights/biases: VMEM-resident, DMA'd once
    batch_map = lambda i: (i, 0)        # activations: tiled along the batch grid

    out = pl.pallas_call(
        dnn_kernel,
        out_shape=jax.ShapeDtypeStruct((b, num_class), out_dtype),
        grid=grid,
        in_specs=[
            pl.BlockSpec((tb, input_size), batch_map),
            pl.BlockSpec(w1.shape, const2d), pl.BlockSpec(b1.shape, const2d),
            pl.BlockSpec(w2.shape, const2d), pl.BlockSpec(b2.shape, const2d),
            pl.BlockSpec(w3.shape, const2d), pl.BlockSpec(b3.shape, const2d),
            pl.BlockSpec(w4.shape, const2d), pl.BlockSpec(b4.shape, const2d),
        ],
        out_specs=pl.BlockSpec((tb, num_class), batch_map),
        compiler_params=pltpu.CompilerParams(
            dimension_semantics=("parallel",),   # megacore on v7x; no-op v5e/v6e
            vmem_limit_bytes=vmem_limit),
    )(x2d, w1, b1, w2, b2, w3, b3, w4, b4)

    return out


def init_params(key, input_size, latent_size, num_class):
    """PyTorch-style Linear init: U(-1/sqrt(fan_in), 1/sqrt(fan_in)).
    Weights stored transposed as (in, out); biases as (1, out). Kept in f32
    as the 'master' copy; the wrapper casts the streamed copies to bf16."""
    dims = [(input_size, latent_size * 4),
            (latent_size * 4, latent_size * 2),
            (latent_size * 2, latent_size),
            (latent_size, num_class)]
    params = []
    for (fan_in, fan_out) in dims:
        key, kw, kb = jax.random.split(key, 3)
        bound = 1.0 / jnp.sqrt(jnp.float32(fan_in))
        w = jax.random.uniform(kw, (fan_in, fan_out), jnp.float32, -bound, bound)
        bias = jax.random.uniform(kb, (1, fan_out), jnp.float32, -bound, bound)
        params.append((w, bias))
    return params


def reference_forward(x, params, compute_dtype=jnp.bfloat16):
    """Pure-JAX reference matching the kernel's mixed-precision recipe.
    NOTE (precision contract): matmul operands are streamed in bf16 with f32
    accumulation, so results differ from a pure-f32 PyTorch forward at ~1e-2."""
    h = x.reshape(x.shape[0], -1).astype(compute_dtype)
    n = len(params)
    for idx, (w, bias) in enumerate(params):
        acc = jnp.dot(h, w.astype(compute_dtype),
                      preferred_element_type=jnp.float32)
        acc = _leaky_relu(acc + bias.astype(jnp.float32))
        h = acc if idx == n - 1 else acc.astype(compute_dtype)
    return jax.nn.log_softmax(h, axis=1)


if __name__ == "__main__":
    # Small shapes consistent with the module: input_size = 4*16 = 64,
    # latent_size = 32, num_class = 8.  (max_len unused in forward.)
    chan, seq = 4, 16
    input_size = chan * seq
    latent_size = 32
    num_class = 8

    key = jax.random.PRNGKey(0)
    key, kx1, kx2 = jax.random.split(key, 3)
    params = init_params(key, input_size, latent_size, num_class)

    # Case 1: tiny batch (single block equal to the full batch extent).
    batch1 = 2
    x1 = jax.random.normal(kx1, (batch1, chan, seq), dtype=jnp.float32)
    out1 = jax.block_until_ready(dnn_forward(x1, params))
    ref1 = reference_forward(x1, params)
    assert out1.shape == (batch1, num_class)
    assert jnp.allclose(out1, ref1, atol=1e-4, rtol=1e-4), "mismatch vs reference (case 1)"

    # Case 2: batch that exercises a >=2-step grid with a ragged last block
    # (B=20 -> tile 16, grid 2, no wrapper-side padding).
    batch2 = 20
    x2 = jax.random.normal(kx2, (batch2, chan, seq), dtype=jnp.float32)
    out2 = jax.block_until_ready(dnn_forward(x2, params))
    ref2 = reference_forward(x2, params)
    assert out2.shape == (batch2, num_class)
    assert jnp.allclose(out2, ref2, atol=1e-4, rtol=1e-4), "mismatch vs reference (case 2)"

    print("KERNEL_OK")
</pallas_src>

<mosaic_0001>
module attributes {stable_mosaic.version = 11 : i64} {
  func.func @dnn_kernel(%arg0: i32, %arg1: memref<2x64xf32, #tpu.memory_space<vmem>>, %arg2: memref<64x128xbf16, #tpu.memory_space<vmem>>, %arg3: memref<1x128xf32, #tpu.memory_space<vmem>>, %arg4: memref<128x64xbf16, #tpu.memory_space<vmem>>, %arg5: memref<1x64xf32, #tpu.memory_space<vmem>>, %arg6: memref<64x32xbf16, #tpu.memory_space<vmem>>, %arg7: memref<1x32xf32, #tpu.memory_space<vmem>>, %arg8: memref<32x8xbf16, #tpu.memory_space<vmem>>, %arg9: memref<1x8xf32, #tpu.memory_space<vmem>>, %arg10: memref<2x8xf32, #tpu.memory_space<vmem>>) attributes {dimension_semantics = [#tpu.dimension_semantics<parallel>], iteration_bounds = array<i64: 1>, scalar_prefetch = 0 : i64, scratch_operands = 0 : i64, tpu.core_type = #tpu.core_type<tc>, window_params = [{transform_indices = @transform_0, window_bounds = array<i64: 2, 64>}, {pipeline_mode = #tpu.pipeline_mode<synchronous>, transform_indices = @transform_1, window_bounds = array<i64: 64, 128>}, {pipeline_mode = #tpu.pipeline_mode<synchronous>, transform_indices = @transform_2, window_bounds = array<i64: 1, 128>}, {pipeline_mode = #tpu.pipeline_mode<synchronous>, transform_indices = @transform_3, window_bounds = array<i64: 128, 64>}, {pipeline_mode = #tpu.pipeline_mode<synchronous>, transform_indices = @transform_4, window_bounds = array<i64: 1, 64>}, {pipeline_mode = #tpu.pipeline_mode<synchronous>, transform_indices = @transform_5, window_bounds = array<i64: 64, 32>}, {pipeline_mode = #tpu.pipeline_mode<synchronous>, transform_indices = @transform_6, window_bounds = array<i64: 1, 32>}, {pipeline_mode = #tpu.pipeline_mode<synchronous>, transform_indices = @transform_7, window_bounds = array<i64: 32, 8>}, {pipeline_mode = #tpu.pipeline_mode<synchronous>, transform_indices = @transform_8, window_bounds = array<i64: 1, 8>}, {transform_indices = @transform_9, window_bounds = array<i64: 2, 8>}]} {
    %c0 = arith.constant 0 : index
    %c0_0 = arith.constant 0 : index
    %0 = vector.load %arg1[%c0, %c0_0] : memref<2x64xf32, #tpu.memory_space<vmem>>, vector<2x64xf32>
    %1 = arith.truncf %0 : vector<2x64xf32> to vector<2x64xbf16>
    %c0_1 = arith.constant 0 : index
    %c0_2 = arith.constant 0 : index
    %2 = vector.load %arg2[%c0_1, %c0_2] : memref<64x128xbf16, #tpu.memory_space<vmem>>, vector<64x128xbf16>
    %cst = arith.constant dense<0.000000e+00> : vector<2x128xf32>
    %3 = tpu.matmul %1, %2, %cst {dimension_numbers = #tpu.dot_dimension_numbers<[1], [0], [0], [1], [0, 0, 1, 1], [], []>} : vector<2x64xbf16>, vector<64x128xbf16>, vector<2x128xf32> -> vector<2x128xf32>
    %c0_3 = arith.constant 0 : index
    %c0_4 = arith.constant 0 : index
    %4 = vector.load %arg3[%c0_3, %c0_4] : memref<1x128xf32, #tpu.memory_space<vmem>>, vector<1x128xf32>
    %5 = vector.broadcast %4 : vector<1x128xf32> to vector<2x128xf32>
    %6 = arith.addf %3, %5 : vector<2x128xf32>
    %cst_5 = arith.constant 0.000000e+00 : f32
    %7 = vector.broadcast %cst_5 : f32 to vector<2x128xf32>
    %8 = arith.cmpf oge, %6, %7 : vector<2x128xf32>
    %cst_6 = arith.constant 0.899999976 : f32
    %9 = vector.broadcast %cst_6 : f32 to vector<2x128xf32>
    %10 = arith.mulf %9, %6 : vector<2x128xf32>
    %11 = arith.select %8, %6, %10 : vector<2x128xi1>, vector<2x128xf32>
    %12 = arith.truncf %11 : vector<2x128xf32> to vector<2x128xbf16>
    %c0_7 = arith.constant 0 : index
    %c0_8 = arith.constant 0 : index
    %13 = vector.load %arg4[%c0_7, %c0_8] : memref<128x64xbf16, #tpu.memory_space<vmem>>, vector<128x64xbf16>
    %cst_9 = arith.constant dense<0.000000e+00> : vector<2x64xf32>
    %14 = tpu.matmul %12, %13, %cst_9 {dimension_numbers = #tpu.dot_dimension_numbers<[1], [0], [0], [1], [0, 0, 1, 1], [], []>} : vector<2x128xbf16>, vector<128x64xbf16>, vector<2x64xf32> -> vector<2x64xf32>
    %c0_10 = arith.constant 0 : index
    %c0_11 = arith.constant 0 : index
    %15 = vector.load %arg5[%c0_10, %c0_11] : memref<1x64xf32, #tpu.memory_space<vmem>>, vector<1x64xf32>
    %16 = vector.broadcast %15 : vector<1x64xf32> to vector<2x64xf32>
    %17 = arith.addf %14, %16 : vector<2x64xf32>
    %cst_12 = arith.constant 0.000000e+00 : f32
    %18 = vector.broadcast %cst_12 : f32 to vector<2x64xf32>
    %19 = arith.cmpf oge, %17, %18 : vector<2x64xf32>
    %cst_13 = arith.constant 0.899999976 : f32
    %20 = vector.broadcast %cst_13 : f32 to vector<2x64xf32>
    %21 = arith.mulf %20, %17 : vector<2x64xf32>
    %22 = arith.select %19, %17, %21 : vector<2x64xi1>, vector<2x64xf32>
    %23 = arith.truncf %22 : vector<2x64xf32> to vector<2x64xbf16>
    %c0_14 = arith.constant 0 : index
    %c0_15 = arith.constant 0 : index
    %24 = vector.load %arg6[%c0_14, %c0_15] : memref<64x32xbf16, #tpu.memory_space<vmem>>, vector<64x32xbf16>
    %cst_16 = arith.constant dense<0.000000e+00> : vector<2x32xf32>
    %25 = tpu.matmul %23, %24, %cst_16 {dimension_numbers = #tpu.dot_dimension_numbers<[1], [0], [0], [1], [0, 0, 1, 1], [], []>} : vector<2x64xbf16>, vector<64x32xbf16>, vector<2x32xf32> -> vector<2x32xf32>
    %c0_17 = arith.constant 0 : index
    %c0_18 = arith.constant 0 : index
    %26 = vector.load %arg7[%c0_17, %c0_18] : memref<1x32xf32, #tpu.memory_space<vmem>>, vector<1x32xf32>
    %27 = vector.broadcast %26 : vector<1x32xf32> to vector<2x32xf32>
    %28 = arith.addf %25, %27 : vector<2x32xf32>
    %cst_19 = arith.constant 0.000000e+00 : f32
    %29 = vector.broadcast %cst_19 : f32 to vector<2x32xf32>
    %30 = arith.cmpf oge, %28, %29 : vector<2x32xf32>
    %cst_20 = arith.constant 0.899999976 : f32
    %31 = vector.broadcast %cst_20 : f32 to vector<2x32xf32>
    %32 = arith.mulf %31, %28 : vector<2x32xf32>
    %33 = arith.select %30, %28, %32 : vector<2x32xi1>, vector<2x32xf32>
    %34 = arith.truncf %33 : vector<2x32xf32> to vector<2x32xbf16>
    %c0_21 = arith.constant 0 : index
    %c0_22 = arith.constant 0 : index
    %35 = vector.load %arg8[%c0_21, %c0_22] : memref<32x8xbf16, #tpu.memory_space<vmem>>, vector<32x8xbf16>
    %cst_23 = arith.constant dense<0.000000e+00> : vector<2x8xf32>
    %36 = tpu.matmul %34, %35, %cst_23 {dimension_numbers = #tpu.dot_dimension_numbers<[1], [0], [0], [1], [0, 0, 1, 1], [], []>} : vector<2x32xbf16>, vector<32x8xbf16>, vector<2x8xf32> -> vector<2x8xf32>
    %c0_24 = arith.constant 0 : index
    %c0_25 = arith.constant 0 : index
    %37 = vector.load %arg9[%c0_24, %c0_25] : memref<1x8xf32, #tpu.memory_space<vmem>>, vector<1x8xf32>
    %38 = vector.broadcast %37 : vector<1x8xf32> to vector<2x8xf32>
    %39 = arith.addf %36, %38 : vector<2x8xf32>
    %cst_26 = arith.constant 0.000000e+00 : f32
    %40 = vector.broadcast %cst_26 : f32 to vector<2x8xf32>
    %41 = arith.cmpf oge, %39, %40 : vector<2x8xf32>
    %cst_27 = arith.constant 0.899999976 : f32
    %42 = vector.broadcast %cst_27 : f32 to vector<2x8xf32>
    %43 = arith.mulf %42, %39 : vector<2x8xf32>
    %44 = arith.select %41, %39, %43 : vector<2x8xi1>, vector<2x8xf32>
    %cst_28 = arith.constant dense<0xFF800000> : vector<2xf32>
    %45 = vector.multi_reduction <maximumf>, %44, %cst_28 [1] : vector<2x8xf32> to vector<2xf32>
    %46 = vector.shape_cast %45 : vector<2xf32> to vector<2x1xf32>
    %47 = vector.broadcast %46 : vector<2x1xf32> to vector<2x8xf32>
    %48 = arith.subf %44, %47 : vector<2x8xf32>
    %49 = math.exp %48 : vector<2x8xf32>
    %cst_29 = arith.constant dense<0.000000e+00> : vector<2xf32>
    %50 = vector.multi_reduction <add>, %49, %cst_29 [1] : vector<2x8xf32> to vector<2xf32>
    %51 = vector.shape_cast %50 : vector<2xf32> to vector<2x1xf32>
    %52 = math.log %51 : vector<2x1xf32>
    %53 = vector.broadcast %52 : vector<2x1xf32> to vector<2x8xf32>
    %54 = arith.subf %48, %53 : vector<2x8xf32>
    %c0_30 = arith.constant 0 : index
    %c0_31 = arith.constant 0 : index
    %55 = vector.load %arg10[%c0_30, %c0_31] : memref<2x8xf32, #tpu.memory_space<vmem>>, vector<2x8xf32>
    tpu.vector_store %arg10[%c0_30, %c0_31], %54 {strides = array<i32>} : memref<2x8xf32, #tpu.memory_space<vmem>>, vector<2x8xf32>,
    return
  }
  func.func @transform_0(%arg0: i32) -> (i32, i32) {
    %c0_i32 = arith.constant 0 : i32
    %c0_i32_0 = arith.constant 0 : i32
    return %arg0, %c0_i32 : i32, i32
  }
  func.func @transform_1(%arg0: i32) -> (i32, i32) {
    %c0_i32 = arith.constant 0 : i32
    %c0_i32_0 = arith.constant 0 : i32
    %c0_i32_1 = arith.constant 0 : i32
    return %c0_i32, %c0_i32_0 : i32, i32
  }
  func.func @transform_2(%arg0: i32) -> (i32, i32) {
    %c0_i32 = arith.constant 0 : i32
    %c0_i32_0 = arith.constant 0 : i32
    %c0_i32_1 = arith.constant 0 : i32
    return %c0_i32, %c0_i32_0 : i32, i32
  }
  func.func @transform_3(%arg0: i32) -> (i32, i32) {
    %c0_i32 = arith.constant 0 : i32
    %c0_i32_0 = arith.constant 0 : i32
    %c0_i32_1 = arith.constant 0 : i32
    return %c0_i32, %c0_i32_0 : i32, i32
  }
  func.func @transform_4(%arg0: i32) -> (i32, i32) {
    %c0_i32 = arith.constant 0 : i32
    %c0_i32_0 = arith.constant 0 : i32
    %c0_i32_1 = arith.constant 0 : i32
    return %c0_i32, %c0_i32_0 : i32, i32
  }
  func.func @transform_5(%arg0: i32) -> (i32, i32) {
    %c0_i32 = arith.constant 0 : i32
    %c0_i32_0 = arith.constant 0 : i32
    %c0_i32_1 = arith.constant 0 : i32
    return %c0_i32, %c0_i32_0 : i32, i32
  }
  func.func @transform_6(%arg0: i32) -> (i32, i32) {
    %c0_i32 = arith.constant 0 : i32
    %c0_i32_0 = arith.constant 0 : i32
    %c0_i32_1 = arith.constant 0 : i32
    return %c0_i32, %c0_i32_0 : i32, i32
  }
  func.func @transform_7(%arg0: i32) -> (i32, i32) {
    %c0_i32 = arith.constant 0 : i32
    %c0_i32_0 = arith.constant 0 : i32
    %c0_i32_1 = arith.constant 0 : i32
    return %c0_i32, %c0_i32_0 : i32, i32
  }
  func.func @transform_8(%arg0: i32) -> (i32, i32) {
    %c0_i32 = arith.constant 0 : i32
    %c0_i32_0 = arith.constant 0 : i32
    %c0_i32_1 = arith.constant 0 : i32
    return %c0_i32, %c0_i32_0 : i32, i32
  }
  func.func @transform_9(%arg0: i32) -> (i32, i32) {
    %c0_i32 = arith.constant 0 : i32
    %c0_i32_0 = arith.constant 0 : i32
    return %arg0, %c0_i32 : i32, i32
  }
}

</mosaic_0001>

<llo_original>
// kernel: tpu_custom_call.1
$region0: #{tpu_custom_call.1}
  #allocation0 [shape = 'u32[]', space=smem, size = 0x4, offset = 0x4, fixed_abs, tag = 'smem constant byte address 0x4 - core index']
  #allocation1 [shape = 'u32[72,128]{1,0:T(1,128)}', space=vmem, size = 0x9000, scoped, tag = 'internal scratch']
  %s0 = inlined_call_operand.vmem [shape: f32[2,64], index: 0, kind: input, shape index: {}]
  %s1 = inlined_call_operand.vmem [shape: bf16[64,128], index: 1, kind: input, shape index: {}]
  %s2 = inlined_call_operand.vmem [shape: f32[1,128], index: 2, kind: input, shape index: {}]
  %s3 = inlined_call_operand.vmem [shape: bf16[128,64], index: 3, kind: input, shape index: {}]
  %s4 = inlined_call_operand.vmem [shape: f32[1,64], index: 4, kind: input, shape index: {}]
  %s5 = inlined_call_operand.vmem [shape: bf16[64,32], index: 5, kind: input, shape index: {}]
  %s6 = inlined_call_operand.vmem [shape: f32[1,32], index: 6, kind: input, shape index: {}]
  %s7 = inlined_call_operand.vmem [shape: bf16[32,8], index: 7, kind: input, shape index: {}]
  %s8 = inlined_call_operand.vmem [shape: f32[1,8], index: 8, kind: input, shape index: {}]
  %s9 = inlined_call_operand.hbm [shape: f32[2,8], index: 9, kind: output, shape index: {}]
  %s10 = sld [smem:[#allocation0]]
  $region46: #{tpu_custom_call.1} parent=0
    _
  %s12 = ssub.s32 1, %s10
  %s13 = scalar_select 0, %s12, %s10
  $region1: #{tpu_custom_call.1} parent=0
    #allocation2 [shape = 'u8[1024]{0}', space=vmem, size = 0x400, scoped, tag = 'output window, operand 0, single buffered']
    #allocation3 [shape = 's32[1]{0}', space=sflag, size = 0x4, scoped, tag = 'scoped memory for tpu_custom_call.1']
    %14 = vsyncpa [#allocation3], 0
    // Predicated region
    $region2: #{tpu_custom_call.1} parent=1 // pred_check
      _
    $region3: #{tpu_custom_call.1} parent=1 // pred_check_branch
      %16 = sbr.rel (0) target = $region5
    $region4: #{tpu_custom_call.1} parent=1 // pred_region
      _
    $region5: #{tpu_custom_call.1} parent=1 // pred_fallthru
      _
    // Predicated region
    $region6: #{tpu_custom_call.1} parent=1 // pred_check
      _
    $region7: #{tpu_custom_call.1} parent=1 // pred_check_branch
      %18 = sbr.rel (0) target = $region9
    $region8: #{tpu_custom_call.1} parent=1 // pred_region
      _
    $region9: #{tpu_custom_call.1} parent=1 // pred_fallthru
      _
    // Predicated region
    $region10: #{tpu_custom_call.1} parent=1 // pred_check
      _
    $region11: #{tpu_custom_call.1} parent=1 // pred_check_branch
      %20 = sbr.rel (0) target = $region13
    $region12: #{tpu_custom_call.1} parent=1 // pred_region
      _
    $region13: #{tpu_custom_call.1} parent=1 // pred_fallthru
      _
    // Predicated region
    $region14: #{tpu_custom_call.1} parent=1 // pred_check
      _
    $region15: #{tpu_custom_call.1} parent=1 // pred_check_branch
      %22 = sbr.rel (0) target = $region17
    $region16: #{tpu_custom_call.1} parent=1 // pred_region
      _
    $region17: #{tpu_custom_call.1} parent=1 // pred_fallthru
      _
    // Predicated region
    $region18: #{tpu_custom_call.1} parent=1 // pred_check
      _
    $region19: #{tpu_custom_call.1} parent=1 // pred_check_branch
      %24 = sbr.rel (0) target = $region21
    $region20: #{tpu_custom_call.1} parent=1 // pred_region
      _
    $region21: #{tpu_custom_call.1} parent=1 // pred_fallthru
      _
    // Predicated region
    $region22: #{tpu_custom_call.1} parent=1 // pred_check
      _
    $region23: #{tpu_custom_call.1} parent=1 // pred_check_branch
      %26 = sbr.rel (0) target = $region25
    $region24: #{tpu_custom_call.1} parent=1 // pred_region
      _
    $region25: #{tpu_custom_call.1} parent=1 // pred_fallthru
      _
    // Predicated region
    $region26: #{tpu_custom_call.1} parent=1 // pred_check
      _
    $region27: #{tpu_custom_call.1} parent=1 // pred_check_branch
      %28 = sbr.rel (0) target = $region29
    $region28: #{tpu_custom_call.1} parent=1 // pred_region
      _
    $region29: #{tpu_custom_call.1} parent=1 // pred_fallthru
      _
    // Predicated region
    $region30: #{tpu_custom_call.1} parent=1 // pred_check
      _
    $region31: #{tpu_custom_call.1} parent=1 // pred_check_branch
      %30 = sbr.rel (0) target = $region33
    $region32: #{tpu_custom_call.1} parent=1 // pred_region
      _
    $region33: #{tpu_custom_call.1} parent=1 // pred_fallthru
      _
    // Predicated region
    $region34: #{tpu_custom_call.1} parent=1 // pred_check
      _
    $region35: #{tpu_custom_call.1} parent=1 // pred_check_branch
      %32 = sbr.rel (0) target = $region37
    $region36: #{tpu_custom_call.1} parent=1 // pred_region
      _
    $region37: #{tpu_custom_call.1} parent=1 // pred_fallthru
      _
    %v34 = vld [vmem:[%s0] sm:$0x3]
    %v35 = vpack.c.bf16 %v34, %v34
    %v36 = vld [vmem:[%s1] sm:$0xf]
    %v37 = vld [vmem:[%s1 + $0x4] sm:$0xf]
    %v38 = vld [vmem:[%s1 + $0x8] sm:$0xf]
    %v39 = vld [vmem:[%s1 + $0xc] sm:$0xf]
    %v40 = vld [vmem:[%s1 + $0x10] sm:$0xf]
    %v41 = vld [vmem:[%s1 + $0x14] sm:$0xf]
    %v42 = vld [vmem:[%s1 + $0x18] sm:$0xf]
    %v43 = vld [vmem:[%s1 + $0x1c] sm:$0xf]
    %v44 = vld [vmem:[%s2] sm:$0x1]
    %v46 = vperm.slane %v44, 0
    %v56 = vunpack.c.l.b16 %v36
    %v57 = vunpack.c.l.b16 %v37
    %v58 = vunpack.c.l.b16 %v38
    %v59 = vunpack.c.l.b16 %v39
    %v60 = vunpack.c.l.b16 %v40
    %v61 = vunpack.c.l.b16 %v41
    %v62 = vunpack.c.l.b16 %v42
    %v63 = vunpack.c.l.b16 %v43
    %v64 = vpack.c.b16 %v57, %v56
    %v65 = vpack.c.b16 %v59, %v58
    %v66 = vpack.c.b16 %v61, %v60
    %v67 = vpack.c.b16 %v63, %v62
    %vm72 = vcmask 523264
    %v74 = vsel %vm72, %v35, 0
    %76 = vmatpush.bf16.msra.mxu0 0
    %77 = vmatpush.bf16.msra.mxu0 0
    %78 = vmatpush.bf16.msra.mxu0 0
    %79 = vmatpush.bf16.msra.mxu0 0
    %80 = vmatpush.bf16.msra.mxu0 %v67
    %81 = vmatpush.bf16.msra.mxu0 %v66
    %82 = vmatpush.bf16.msra.mxu0 %v65
    %83 = vmatpush.bf16.msra.mxu0 %v64
    %84 = vmatmul.bf16.gmra.mxu0 %v74
    %v85 = vpop.f32.mrf.mxu0
    %v86 = vadd.f32 %v46, %v85
    %v87 = vpop.f32.mrf.mxu0
    %88 = vdwg.mxu0
    %vm89 = vcmp.ge.f32.partialorder %v86, 0.0
    %v90 = vmul.f32 %v86, 0.9
    %v91 = vsel %vm89, %v86, %v90
    %v92 = vpack.c.bf16 %v91, %v91
    %v93 = vld [vmem:[%s3] sm:$0xf]
    %v94 = vld [vmem:[%s3 + $0x4] sm:$0xf]
    %v95 = vld [vmem:[%s3 + $0x8] sm:$0xf]
    %v96 = vld [vmem:[%s3 + $0xc] sm:$0xf]
    %v97 = vld [vmem:[%s3 + $0x10] sm:$0xf]
    %v98 = vld [vmem:[%s3 + $0x14] sm:$0xf]
    %v99 = vld [vmem:[%s3 + $0x18] sm:$0xf]
    %v100 = vld [vmem:[%s3 + $0x1c] sm:$0xf]
    %v101 = vld [vmem:[%s3 + $0x20] sm:$0xf]
    %v102 = vld [vmem:[%s3 + $0x24] sm:$0xf]
    %v103 = vld [vmem:[%s3 + $0x28] sm:$0xf]
    %v104 = vld [vmem:[%s3 + $0x2c] sm:$0xf]
    %v105 = vld [vmem:[%s3 + $0x30] sm:$0xf]
    %v106 = vld [vmem:[%s3 + $0x34] sm:$0xf]
    %v107 = vld [vmem:[%s3 + $0x38] sm:$0xf]
    %v108 = vld [vmem:[%s3 + $0x3c] sm:$0xf]
    %v109 = vld [vmem:[%s4] sm:$0x1]
    %v111 = vperm.slane %v109, 0
    %v129 = vunpack.c.l.b16 %v93
    %v130 = vunpack.c.l.b16 %v94
    %v131 = vunpack.c.l.b16 %v95
    %v132 = vunpack.c.l.b16 %v96
    %v133 = vunpack.c.l.b16 %v97
    %v134 = vunpack.c.l.b16 %v98
    %v135 = vunpack.c.l.b16 %v99
    %v136 = vunpack.c.l.b16 %v100
    %v137 = vunpack.c.l.b16 %v101
    %v138 = vunpack.c.l.b16 %v102
    %v139 = vunpack.c.l.b16 %v103
    %v140 = vunpack.c.l.b16 %v104
    %v141 = vunpack.c.l.b16 %v105
    %v142 = vunpack.c.l.b16 %v106
    %v143 = vunpack.c.l.b16 %v107
    %v144 = vunpack.c.l.b16 %v108
    %v145 = vpack.c.b16 %v130, %v129
    %v146 = vpack.c.b16 %v132, %v131
    %v147 = vpack.c.b16 %v134, %v133
    %v148 = vpack.c.b16 %v136, %v135
    %v149 = vpack.c.b16 %v138, %v137
    %v150 = vpack.c.b16 %v140, %v139
    %v151 = vpack.c.b16 %v142, %v141
    %v152 = vpack.c.b16 %v144, %v143
    %161 = vmatpush.bf16.msra.mxu0 %v152
    %162 = vmatpush.bf16.msra.mxu0 %v151
    %163 = vmatpush.bf16.msra.mxu0 %v150
    %164 = vmatpush.bf16.msra.mxu0 %v149
    %165 = vmatpush.bf16.msra.mxu0 %v148
    %166 = vmatpush.bf16.msra.mxu0 %v147
    %167 = vmatpush.bf16.msra.mxu0 %v146
    %168 = vmatpush.bf16.msra.mxu0 %v145
    %169 = vmatmul.bf16.gmra.mxu0 %v92
    %v170 = vpop.f32.mrf.mxu0
    %v171 = vadd.f32 %v111, %v170
    %v172 = vpop.f32.mrf.mxu0
    %173 = vdwg.mxu0
    %vm174 = vcmp.ge.f32.partialorder %v171, 0.0
    %v175 = vmul.f32 %v171, 0.9
    %v176 = vsel %vm174, %v171, %v175
    %v177 = vpack.c.bf16 %v176, %v176
    %v178 = vld [vmem:[%s5] sm:$0xf]
    %v179 = vld [vmem:[%s5 + $0x4] sm:$0xf]
    %v180 = vld [vmem:[%s5 + $0x8] sm:$0xf]
    %v181 = vld [vmem:[%s5 + $0xc] sm:$0xf]
    %v182 = vld [vmem:[%s5 + $0x10] sm:$0xf]
    %v183 = vld [vmem:[%s5 + $0x14] sm:$0xf]
    %v184 = vld [vmem:[%s5 + $0x18] sm:$0xf]
    %v185 = vld [vmem:[%s5 + $0x1c] sm:$0xf]
    %v186 = vld [vmem:[%s6] sm:$0x1]
    %v188 = vperm.slane %v186, 0
    %v198 = vunpack.c.l.b16 %v178
    %v199 = vunpack.c.l.b16 %v179
    %v200 = vunpack.c.l.b16 %v180
    %v201 = vunpack.c.l.b16 %v181
    %v202 = vunpack.c.l.b16 %v182
    %v203 = vunpack.c.l.b16 %v183
    %v204 = vunpack.c.l.b16 %v184
    %v205 = vunpack.c.l.b16 %v185
    %v206 = vpack.c.b16 %v199, %v198
    %v207 = vpack.c.b16 %v201, %v200
    %v208 = vpack.c.b16 %v203, %v202
    %v209 = vpack.c.b16 %v205, %v204
    %v215 = vsel %vm72, %v177, 0
    %217 = vmatpush.bf16.msra.mxu0 0
    %218 = vmatpush.bf16.msra.mxu0 0
    %219 = vmatpush.bf16.msra.mxu0 0
    %220 = vmatpush.bf16.msra.mxu0 0
    %221 = vmatpush.bf16.msra.mxu0 %v209
    %222 = vmatpush.bf16.msra.mxu0 %v208
    %223 = vmatpush.bf16.msra.mxu0 %v207
    %224 = vmatpush.bf16.msra.mxu0 %v206
    %225 = vmatmul.bf16.gmra.mxu0 %v215
    %v226 = vpop.f32.mrf.mxu0
    %v227 = vadd.f32 %v188, %v226
    %v228 = vpop.f32.mrf.mxu0
    %229 = vdwg.mxu0
    %vm230 = vcmp.ge.f32.partialorder %v227, 0.0
    %v231 = vmul.f32 %v227, 0.9
    %v232 = vsel %vm230, %v227, %v231
    %v233 = vpack.c.bf16 %v232, %v232
    %v234 = vld [vmem:[%s7] sm:$0xf]
    %v235 = vld [vmem:[%s7 + $0x4] sm:$0xf]
    %v236 = vld [vmem:[%s7 + $0x8] sm:$0xf]
    %v237 = vld [vmem:[%s7 + $0xc] sm:$0xf]
    %v238 = vld [vmem:[%s8] sm:$0x1]
    %v240 = vperm.slane %v238, 0
    %v246 = vunpack.c.l.b16 %v234
    %v247 = vunpack.c.l.b16 %v235
    %v248 = vunpack.c.l.b16 %v236
    %v249 = vunpack.c.l.b16 %v237
    %v250 = vpack.c.b16 %v247, %v246
    %v251 = vpack.c.b16 %v249, %v248
    %vm254 = vcmask 261120
    %v256 = vsel %vm254, %v233, 0
    %258 = vmatpush.bf16.msra.mxu0 0
    %259 = vmatpush.bf16.msra.mxu0 0
    %260 = vmatpush.bf16.msra.mxu0 0
    %261 = vmatpush.bf16.msra.mxu0 0
    %262 = vmatpush.bf16.msra.mxu0 0
    %263 = vmatpush.bf16.msra.mxu0 0
    %264 = vmatpush.bf16.msra.mxu0 %v251
    %265 = vmatpush.bf16.msra.mxu0 %v250
    %266 = vmatmul.bf16.gmra.mxu0 %v256
    %v267 = vpop.f32.mrf.mxu0
    %v268 = vadd.f32 %v240, %v267
    %v269 = vpop.f32.mrf.mxu0
    %270 = vdwg.mxu0
    %vm271 = vcmp.ge.f32.partialorder %v268, 0.0
    %v272 = vmul.f32 %v268, 0.9
    %v273 = vsel %vm271, %v268, %v272
    %vm274 = vcmask 58368
    %v275 = vsel %vm274, %v273, -inf
    %276 = vmax.xlane.f32.xlu0 %v275
    %v277 = vpop.xlane.xlu0 %276
    %v278 = vsub.f32 %v273, %v277
    %v279 = vmul.f32 %v278, 1.442695
    %v280 = vpow.pop %v279
    %v281 = vsel %vm274, %v280, 0.0
    %282 = vadd.xlane.f32.xlu0 %v281
    %v283 = vpop.xlane.xlu0 %282
    %v284 = vlog2.pop %v283
    %v285 = vmul.f32 %v284, 0.6931472
    %v286 = vsub.f32 %v278, %v285
    %287 = vst.msk [vmem:[#allocation2] sm:$0x3] %vm274, %v286
    // Predicated region
    $region38: #{tpu_custom_call.1} parent=1 // pred_check
      _
    $region39: #{tpu_custom_call.1} parent=1 // pred_check_branch
      %289 = sbr.rel (0) target = $region41
    $region40: #{tpu_custom_call.1} parent=1 // pred_region
      %291 = vsyncadd [#allocation3], 0
      %s293 = sshll.u32 [#allocation2], 4
      %s294 = int_to_ptr.vmem [resolvable:$true] %s293
      %s295 = sshll.u32 %s9, 4
      %s296 = int_to_ptr.hbm [resolvable:$true] %s295
      %298 = dma.vmem_to_hbm [thread:$0]  %s294, 32, %s296, [#allocation3]
    $region41: #{tpu_custom_call.1} parent=1 // pred_fallthru
      _
    // Predicated region
    $region42: #{tpu_custom_call.1} parent=1 // pred_check
      _
    $region43: #{tpu_custom_call.1} parent=1 // pred_check_branch
      %300 = sbr.rel (0) target = $region45
    $region44: #{tpu_custom_call.1} parent=1 // pred_region
      %302 = dma.done [#allocation3], 32
    $region45: #{tpu_custom_call.1} parent=1 // pred_fallthru
      _
    %303 = vsyncpa [#allocation3], 1

</llo_original>
